<compile_context>
chip_gen: v7x
topology: tpu7x:2x2x1
jax: 0.10.0
libtpu: 0.0.40
codegen_flags: <defaults>
</compile_context>

<pallas_src>
import functools

import jax
import jax.numpy as jnp
import numpy as np
from jax.experimental import pallas as pl
from jax.experimental.pallas import tpu as pltpu

_MXU_DTYPE = jnp.bfloat16      # MXU operands; accumulation stays f32
_LANE = 128
_DEF_TILE = 512                # preferred matmul tile (128-aligned)


def _round_up(x, m):
    return ((x + m - 1) // m) * m


def _pad2(a, rows, cols):
    if a.shape == (rows, cols):
        return a
    return jnp.pad(a, ((0, rows - a.shape[0]), (0, cols - a.shape[1])))


def _phys_vmem_bytes():
    try:
        return int(pltpu.get_tpu_info().vmem_capacity_bytes)
    except Exception:
        return 64 * 1024 * 1024        # conservative (v7x per-TensorCore)


def _vmem_limit(*nbytes):
    # ~4x the per-tile buffer sum with a 32 MiB floor (covers double
    # buffering + internal temporaries), capped at 3/4 of physical VMEM so
    # the limit is valid on v7x (64 MiB) as well as v5e/v6e (128 MiB).
    cap = (3 * _phys_vmem_bytes()) // 4
    want = max(4 * sum(nbytes), 32 * 1024 * 1024)
    return int(min(want, cap))


def _pick_mm_tile(dim, pref, prefer_multi=False):
    """Pad `dim` only to the next 128 multiple and pick the largest
    128-multiple tile <= pref that divides it (avoids padding waste for
    non-tile-multiple feature sizes).  With prefer_multi, prefer a tile
    giving >=2 blocks so v7x's 2 TensorCores both get work."""
    dim_pad = _round_up(dim, _LANE)
    cap = min(pref, dim_pad)
    divs = [t for t in range(_LANE, cap + 1, _LANE) if dim_pad % t == 0]
    if not divs:                       # can't happen (128 always divides)
        return dim_pad, dim_pad
    if prefer_multi:
        multi = [t for t in divs if dim_pad // t >= 2]
        if multi:
            return multi[-1], dim_pad
    return divs[-1], dim_pad


# ------------------ tiled matmul (rowscale * (A@B) + bias) ------------------
def _matmul_bias_kernel(a_ref, b_ref, bias_ref, rs_ref, o_ref, acc_ref):
    k = pl.program_id(2)

    @pl.when(k == 0)
    def _init():
        acc_ref[...] = jnp.zeros_like(acc_ref)

    acc_ref[...] += jnp.dot(a_ref[...], b_ref[...],
                            preferred_element_type=jnp.float32)

    @pl.when(k == pl.num_programs(2) - 1)
    def _store():
        o_ref[...] = (acc_ref[...] * rs_ref[...]
                      + bias_ref[...]).astype(o_ref.dtype)


def matmul_bias(a, b, bias, *, rowscale=None, out_dtype=jnp.float32,
                tm=_DEF_TILE, tn=_DEF_TILE, tk=_DEF_TILE):
    """Tiled `rowscale[:, None] * (a @ b) + bias[None, :]`.

    bf16 MXU operands, f32 accumulation; rowscale (optional) is applied in
    f32 at finalize so degree normalization never needs a dense [N, N]
    normalized matrix.
    """
    m_dim, k_dim = a.shape
    k_dim2, n_dim = b.shape
    assert k_dim == k_dim2 and bias.shape == (n_dim,)

    tm, m_pad = _pick_mm_tile(m_dim, tm, prefer_multi=True)
    tn, n_pad = _pick_mm_tile(n_dim, tn)
    tk, k_pad = _pick_mm_tile(k_dim, tk)

    a_p = _pad2(a.astype(_MXU_DTYPE), m_pad, k_pad)
    b_p = _pad2(b.astype(_MXU_DTYPE), k_pad, n_pad)
    bias_p = _pad2(bias.reshape(1, -1).astype(jnp.float32), 1, n_pad)
    if rowscale is None:
        rs_p = jnp.ones((m_pad, 1), jnp.float32)
    else:
        rs_p = _pad2(rowscale.reshape(-1, 1).astype(jnp.float32), m_pad, 1)
    out_bytes = jnp.dtype(out_dtype).itemsize

    out = pl.pallas_call(
        _matmul_bias_kernel,
        out_shape=jax.ShapeDtypeStruct((m_pad, n_pad), out_dtype),
        grid_spec=pltpu.PrefetchScalarGridSpec(
            num_scalar_prefetch=0,
            grid=(m_pad // tm, n_pad // tn, k_pad // tk),
            in_specs=[
                pl.BlockSpec((tm, tk), lambda i, j, k: (i, k)),
                pl.BlockSpec((tk, tn), lambda i, j, k: (k, j)),
                pl.BlockSpec((1, tn), lambda i, j, k: (0, j)),
                pl.BlockSpec((tm, 1), lambda i, j, k: (i, 0)),
            ],
            out_specs=pl.BlockSpec((tm, tn), lambda i, j, k: (i, j)),
            scratch_shapes=[pltpu.VMEM((tm, tn), jnp.float32)],
        ),
        compiler_params=pltpu.CompilerParams(
            dimension_semantics=("parallel", "parallel", "arbitrary"),
            vmem_limit_bytes=_vmem_limit(
                2 * tm * tk * 2, 2 * tk * tn * 2,
                2 * tm * tn * out_bytes, tm * tn * 4, 4 * tm * 4),
        ),
    )(a_p, b_p, bias_p, rs_p)
    return out[:m_dim, :n_dim]


# ----------------------------- GCNConv ------------------------------------
# out = D^{-1/2} (A + I) D^{-1/2} (X W) + b
def gcn_forward(x, edge_index, w, b):
    n, _ = x.shape
    f_out = w.shape[1]
    n_pad = _round_up(n, _LANE)
    src, dst = edge_index[0], edge_index[1]

    # 0/1 adjacency (+ self loops): built once, at padded shape, in MXU dtype.
    a = jnp.zeros((n_pad, n_pad), _MXU_DTYPE).at[dst, src].set(1.0)
    a = a.at[jnp.arange(n), jnp.arange(n)].set(1.0)
    deg = jnp.sum(a, axis=1, dtype=jnp.float32)            # exact integer counts
    dinv = jnp.where(deg > 0, jax.lax.rsqrt(deg), 0.0)     # [n_pad]

    # X @ W once; bf16 intermediate (the aggregation matmul consumes bf16).
    xw = matmul_bias(x, w, jnp.zeros((f_out,), jnp.float32),
                     out_dtype=_MXU_DTYPE)                 # [n, f_out]

    # D^-1/2 (A+I) D^-1/2 (XW): right scale folded into rows of XW (small
    # [N,F] elementwise glue), left scale folded into the matmul finalize.
    xw_s = jnp.pad(xw * dinv[:n, None], ((0, n_pad - n), (0, 0)))
    out = matmul_bias(a, xw_s, b, rowscale=dinv)
    return out[:n]


# ----------------------------- SAGEConv -----------------------------------
# out = (mean_{j in N(i)} x_j) @ W_l + b_l + x_i @ W_r
def sage_forward(x, edge_index, w_l, b_l, w_r):
    n, f_in = x.shape
    n_pad = _round_up(n, _LANE)
    src, dst = edge_index[0], edge_index[1]

    a = jnp.zeros((n_pad, n_pad), _MXU_DTYPE).at[dst, src].set(1.0)
    deg = jnp.sum(a, axis=1, dtype=jnp.float32)
    inv_deg = jnp.where(deg > 0, 1.0 / jnp.maximum(deg, 1.0), 0.0)

    x_p = jnp.pad(x, ((0, n_pad - n), (0, 0)))
    # mean aggregation: (1/deg) ⊙_row (A @ X); scale folded into the finalize.
    agg = matmul_bias(a, x_p, jnp.zeros((f_in,), jnp.float32),
                      rowscale=inv_deg, out_dtype=_MXU_DTYPE)[:n]

    # agg @ W_l + x @ W_r + b_l  ==  [agg | x] @ [[W_l], [W_r]] + b_l
    h = jnp.concatenate([agg, x.astype(_MXU_DTYPE)], axis=1)
    w_cat = jnp.concatenate([w_l, w_r], axis=0)
    return matmul_bias(h, w_cat, b_l)


# ----------------------------- GATConv ------------------------------------
# per-head: e[i,j] = LeakyReLU(a_dst . (W_h x_i) + a_src . (W_h x_j), 0.2)
# attn = softmax over neighbors j of i (incl. self loop); out_h = attn @ (X W_h)
def _gat_kernel(adj_ref, adst_ref, asrcT_ref, xw_ref, b_ref, o_ref,
                m_sc, l_sc, acc_sc, *, heads, chp, t, xw_resident):
    j = pl.program_id(1)

    @pl.when(j == 0)
    def _init():
        m_sc[...] = jnp.full_like(m_sc, -1e30)
        l_sc[...] = jnp.zeros_like(l_sc)
        acc_sc[...] = jnp.zeros_like(acc_sc)

    adj_f = adj_ref[...].astype(jnp.float32)        # int8 mask tile -> f32 once

    # Skip entirely-empty adjacency tiles (sparse graphs): correct because an
    # all-masked tile leaves m / l / acc unchanged.
    @pl.when(jnp.max(adj_f) > 0.0)
    def _compute():
        mask = adj_f > 0.0
        if xw_resident:
            j0 = pl.multiple_of(j * t, _LANE)
            xw = xw_ref[pl.ds(j0, t), :]            # [t, heads*chp] bf16
        else:
            xw = xw_ref[...]
        for h in range(heads):                      # heads is small & static
            e = adst_ref[:, h:h + 1] + asrcT_ref[h:h + 1, :]     # [t, t]
            e = jnp.maximum(e, 0.2 * e)             # LeakyReLU (slope 0.2)
            e = jnp.where(mask, e, -1e30)
            # online softmax over the neighbor (column-tile) axis
            m_prev = m_sc[h]                        # [t, 1]
            m_new = jnp.maximum(m_prev, jnp.max(e, axis=-1, keepdims=True))
            alpha = jnp.exp(m_prev - m_new)
            p = jnp.where(mask, jnp.exp(e - m_new), 0.0)
            l_sc[h] = alpha * l_sc[h] + jnp.sum(p, axis=-1, keepdims=True)
            hs = slice(h * chp, (h + 1) * chp)      # 128-lane-aligned slice
            acc_sc[:, hs] = alpha * acc_sc[:, hs] + jnp.dot(
                p.astype(xw.dtype), xw[:, hs],
                preferred_element_type=jnp.float32)
            m_sc[h] = m_new

    @pl.when(j == pl.num_programs(1) - 1)
    def _finalize():
        for h in range(heads):
            hs = slice(h * chp, (h + 1) * chp)
            # clamp: padded rows have l == 0 (keeps the padded region finite)
            inv = pl.reciprocal(jnp.maximum(l_sc[h], 1e-30), approx=True)
            acc_sc[:, hs] = acc_sc[:, hs] * inv
        # single lane-dense (multiple-of-128 wide) store per row tile
        o_ref[...] = (acc_sc[...] + b_ref[...]).astype(o_ref.dtype)


def gat_forward(x, edge_index, w, att_src, att_dst, b, *, heads, tile=_DEF_TILE):
    # TODO(synk): edge_attr path of GATConv is only active when edge_dim is
    # set; with the module defaults (edge_dim=None) edge_attr is unused.
    n = x.shape[0]
    hc = w.shape[1]
    ch = hc // heads
    chp = _round_up(ch, _LANE)          # per-head channels padded to 128 lanes
    hw = heads * chp

    t, n_pad = _pick_mm_tile(n, tile, prefer_multi=True)
    src, dst = edge_index[0], edge_index[1]

    # adjacency is only a boolean mask in the kernel -> build it once, at
    # padded shape, in int8 (halves the dominant N^2 HBM stream).
    adj = jnp.zeros((n_pad, n_pad), jnp.int8).at[dst, src].set(1)
    adj = adj.at[jnp.arange(n), jnp.arange(n)].set(1)          # self loops

    # feature transform once as a single wide matmul; bf16 intermediate.
    xw = matmul_bias(x, w, jnp.zeros((hc,), jnp.float32),
                     out_dtype=_MXU_DTYPE)                     # [N, H*C]

    # per-head attention logits (tiny O(N*H*C) glue)
    xw_heads = xw.reshape(n, heads, ch)
    a_src = jnp.einsum("nhc,hc->nh", xw_heads.astype(jnp.float32), att_src)
    a_dst = jnp.einsum("nhc,hc->nh", xw_heads.astype(jnp.float32), att_dst)

    # 128-lane-aligned per-head layout [n_pad, heads*chp]
    xw_p = jnp.pad(xw_heads, ((0, n_pad - n), (0, 0), (0, chp - ch))
                   ).reshape(n_pad, hw)
    adst_p = jnp.pad(a_dst.astype(jnp.float32), ((0, n_pad - n), (0, 0)))
    asrcT_p = jnp.pad(a_src.T.astype(jnp.float32), ((0, 0), (0, n_pad - n)))
    bias_p = jnp.pad(b.astype(jnp.float32).reshape(heads, ch),
                     ((0, 0), (0, chp - ch))).reshape(1, hw)

    # keep XW resident in VMEM when small; otherwise stream the j-th row block
    xw_resident = (2 * n_pad * hw * 2) <= 12 * 1024 * 1024
    if xw_resident:
        xw_spec = pl.BlockSpec((n_pad, hw), lambda i, j: (0, 0))
        xw_rows = n_pad
    else:
        xw_spec = pl.BlockSpec((t, hw), lambda i, j: (j, 0))
        xw_rows = t

    kernel = functools.partial(_gat_kernel, heads=heads, chp=chp, t=t,
                               xw_resident=xw_resident)
    out = pl.pallas_call(
        kernel,
        out_shape=jax.ShapeDtypeStruct((n_pad, hw), jnp.float32),
        grid_spec=pltpu.PrefetchScalarGridSpec(
            num_scalar_prefetch=0,
            grid=(n_pad // t, n_pad // t),
            in_specs=[
                pl.BlockSpec((t, t), lambda i, j: (i, j)),         # int8 adj tile
                pl.BlockSpec((t, heads), lambda i, j: (i, 0)),     # a_dst (rows)
                pl.BlockSpec((heads, t), lambda i, j: (0, j)),     # a_src (cols, pre-T)
                xw_spec,                                           # xw (resident/stream)
                pl.BlockSpec((1, hw), lambda i, j: (0, 0)),        # bias
            ],
            out_specs=pl.BlockSpec((t, hw), lambda i, j: (i, 0)),
            scratch_shapes=[
                pltpu.VMEM((heads, t, 1), jnp.float32),   # running row max per head
                pltpu.VMEM((heads, t, 1), jnp.float32),   # running softmax denom
                pltpu.VMEM((t, hw), jnp.float32),         # full-width accumulator
            ],
        ),
        compiler_params=pltpu.CompilerParams(
            dimension_semantics=("parallel", "arbitrary"),
            vmem_limit_bytes=_vmem_limit(
                2 * t * t * 1, 2 * xw_rows * hw * 2, 2 * t * hw * 4,
                t * hw * 4, 4 * heads * t * 4),
        ),
    )(adj, adst_p, asrcT_p, xw_p, bias_p)
    return out.reshape(n_pad, heads, chp)[:n, :, :ch].reshape(n, hc)


# ---------------------------- GeneralConv ----------------------------------
class GeneralConv:
    def __init__(self, conv_name, in_hid, out_hid, n_heads, key):
        self.conv_name = conv_name
        self.n_heads = n_heads
        k = jax.random.split(key, 6)
        scale = 1.0 / np.sqrt(in_hid)
        if conv_name == "gcn":
            self.w = jax.random.normal(k[0], (in_hid, out_hid), jnp.float32) * scale
            self.b = jax.random.normal(k[1], (out_hid,), jnp.float32) * 0.01
        elif conv_name == "gat":
            ch = out_hid // n_heads
            self.w = jax.random.normal(k[0], (in_hid, n_heads * ch), jnp.float32) * scale
            self.att_src = jax.random.normal(k[1], (n_heads, ch), jnp.float32) * 0.1
            self.att_dst = jax.random.normal(k[2], (n_heads, ch), jnp.float32) * 0.1
            self.b = jax.random.normal(k[3], (n_heads * ch,), jnp.float32) * 0.01
        elif conv_name == "sage":
            self.w_l = jax.random.normal(k[0], (in_hid, out_hid), jnp.float32) * scale
            self.b_l = jax.random.normal(k[1], (out_hid,), jnp.float32) * 0.01
            self.w_r = jax.random.normal(k[2], (in_hid, out_hid), jnp.float32) * scale
        else:
            print("no predefined conv layer {} !".format(conv_name))

    def __call__(self, input_x, edge_index, edge_attr=None):
        if self.conv_name == "gcn":
            return gcn_forward(input_x, edge_index, self.w, self.b)
        elif self.conv_name == "gat":
            return gat_forward(input_x, edge_index, self.w, self.att_src,
                               self.att_dst, self.b, heads=self.n_heads)
        elif self.conv_name == "sage":
            return sage_forward(input_x, edge_index, self.w_l, self.b_l, self.w_r)


# ------------------------- pure-JAX references ------------------------------
def _gcn_ref(x, edge_index, w, b):
    n = x.shape[0]
    a = jnp.zeros((n, n)).at[edge_index[1], edge_index[0]].set(1.0)
    a = a.at[jnp.arange(n), jnp.arange(n)].set(1.0)
    d = jnp.where(a.sum(1) > 0, jax.lax.rsqrt(a.sum(1)), 0.0)
    m = d[:, None] * a * d[None, :]
    return m @ (x @ w) + b[None, :]


def _gat_ref(x, edge_index, w, att_src, att_dst, b, heads):
    n = x.shape[0]
    ch = w.shape[1] // heads
    adj = jnp.zeros((n, n)).at[edge_index[1], edge_index[0]].set(1.0)
    adj = adj.at[jnp.arange(n), jnp.arange(n)].set(1.0)
    outs = []
    for h in range(heads):
        xw = x @ w[:, h * ch:(h + 1) * ch]
        asrc = (xw * att_src[h]).sum(-1)
        adst = (xw * att_dst[h]).sum(-1)
        e = adst[:, None] + asrc[None, :]
        e = jnp.where(e >= 0, e, 0.2 * e)
        e = jnp.where(adj > 0, e, -jnp.inf)
        attn = jax.nn.softmax(e, axis=-1)
        outs.append(attn @ xw + b[h * ch:(h + 1) * ch][None, :])
    return jnp.concatenate(outs, axis=-1)


def _sage_ref(x, edge_index, w_l, b_l, w_r):
    n = x.shape[0]
    a = jnp.zeros((n, n)).at[edge_index[1], edge_index[0]].set(1.0)
    deg = a.sum(1, keepdims=True)
    m = jnp.where(deg > 0, a / jnp.maximum(deg, 1.0), 0.0)
    return (m @ x) @ w_l + b_l[None, :] + x @ w_r


if __name__ == "__main__":
    key = jax.random.PRNGKey(0)
    kx, kp1, kp2, kp3 = jax.random.split(key, 4)

    N, in_hid, out_hid, n_heads = 16, 32, 32, 4
    x = jax.random.normal(kx, (N, in_hid), jnp.float32)

    # deterministic graph: ring edges + chord edges (no duplicates / self loops)
    idx = jnp.arange(N, dtype=jnp.int32)
    src = jnp.concatenate([idx, idx])
    dst = jnp.concatenate([(idx + 1) % N, (idx + 3) % N]).astype(jnp.int32)
    edge_index = jnp.stack([src, dst])  # [2, E], row0 = src, row1 = dst

    ok = True
    for name, pkey in (("gcn", kp1), ("gat", kp2), ("sage", kp3)):
        conv = GeneralConv(name, in_hid, out_hid, n_heads, pkey)
        out = jax.block_until_ready(conv(x, edge_index))
        if name == "gcn":
            ref = _gcn_ref(x, edge_index, conv.w, conv.b)
        elif name == "gat":
            ref = _gat_ref(x, edge_index, conv.w, conv.att_src, conv.att_dst,
                           conv.b, n_heads)
        else:
            ref = _sage_ref(x, edge_index, conv.w_l, conv.b_l, conv.w_r)
        out_np, ref_np = np.asarray(out), np.asarray(ref)
        # bf16 MXU operands + approximate reciprocal -> relaxed tolerance
        if out_np.shape != ref_np.shape or not np.allclose(
                out_np, ref_np, atol=5e-2, rtol=5e-2):
            ok = False
            err = float(np.max(np.abs(out_np - ref_np)))
            print(f"mismatch in {name}: max abs err {err:.4e}")

    if ok:
        print("KERNEL_OK")
</pallas_src>

<mosaic_0001>
module attributes {stable_mosaic.version = 11 : i64} {
  func.func @_matmul_bias_kernel(%arg0: i32, %arg1: i32, %arg2: i32, %arg3: memref<128x128xbf16, #tpu.memory_space<vmem>>, %arg4: memref<128x128xbf16, #tpu.memory_space<vmem>>, %arg5: memref<1x128xf32, #tpu.memory_space<vmem>>, %arg6: memref<128x1xf32, #tpu.memory_space<vmem>>, %arg7: memref<128x128xbf16, #tpu.memory_space<vmem>>, %arg8: memref<128x128xf32, #tpu.memory_space<vmem>>) attributes {dimension_semantics = [#tpu.dimension_semantics<parallel>, #tpu.dimension_semantics<parallel>, #tpu.dimension_semantics<arbitrary>], iteration_bounds = array<i64: 1, 1, 1>, scalar_prefetch = 0 : i64, scratch_operands = 1 : i64, tpu.core_type = #tpu.core_type<tc>, window_params = [{transform_indices = @transform_0, window_bounds = array<i64: 128, 128>}, {transform_indices = @transform_1, window_bounds = array<i64: 128, 128>}, {transform_indices = @transform_2, window_bounds = array<i64: 1, 128>}, {transform_indices = @transform_3, window_bounds = array<i64: 128, 1>}, {transform_indices = @transform_4, window_bounds = array<i64: 128, 128>}]} {
    %c0_i32 = arith.constant 0 : i32
    %0 = arith.cmpi eq, %arg2, %c0_i32 : i32
    %1 = arith.extui %0 : i1 to i32
    %c0_i32_0 = arith.constant 0 : i32
    %2 = arith.cmpi ne, %1, %c0_i32_0 : i32
    scf.if %2 {
      %cst_10 = arith.constant 0.000000e+00 : f32
      %12 = vector.broadcast %cst_10 : f32 to vector<128x128xf32>
      %c0_11 = arith.constant 0 : index
      %c0_12 = arith.constant 0 : index
      %13 = vector.load %arg8[%c0_11, %c0_12] : memref<128x128xf32, #tpu.memory_space<vmem>>, vector<128x128xf32>
      tpu.vector_store %arg8[%c0_11, %c0_12], %12 {strides = array<i32>} : memref<128x128xf32, #tpu.memory_space<vmem>>, vector<128x128xf32>,
    } else {
    }
    %c0 = arith.constant 0 : index
    %c0_1 = arith.constant 0 : index
    %3 = vector.load %arg8[%c0, %c0_1] : memref<128x128xf32, #tpu.memory_space<vmem>>, vector<128x128xf32>
    %c0_2 = arith.constant 0 : index
    %c0_3 = arith.constant 0 : index
    %4 = vector.load %arg3[%c0_2, %c0_3] : memref<128x128xbf16, #tpu.memory_space<vmem>>, vector<128x128xbf16>
    %c0_4 = arith.constant 0 : index
    %c0_5 = arith.constant 0 : index
    %5 = vector.load %arg4[%c0_4, %c0_5] : memref<128x128xbf16, #tpu.memory_space<vmem>>, vector<128x128xbf16>
    %cst = arith.constant dense<0.000000e+00> : vector<128x128xf32>
    %6 = tpu.matmul %4, %5, %cst {dimension_numbers = #tpu.dot_dimension_numbers<[1], [0], [0], [1], [0, 0, 1, 1], [], []>} : vector<128x128xbf16>, vector<128x128xbf16>, vector<128x128xf32> -> vector<128x128xf32>
    %7 = arith.addf %3, %6 : vector<128x128xf32>
    %c0_6 = arith.constant 0 : index
    %c0_7 = arith.constant 0 : index
    %8 = vector.load %arg8[%c0_6, %c0_7] : memref<128x128xf32, #tpu.memory_space<vmem>>, vector<128x128xf32>
    tpu.vector_store %arg8[%c0_6, %c0_7], %7 {strides = array<i32>} : memref<128x128xf32, #tpu.memory_space<vmem>>, vector<128x128xf32>,
    %c0_i32_8 = arith.constant 0 : i32
    %9 = arith.cmpi eq, %arg2, %c0_i32_8 : i32
    %10 = arith.extui %9 : i1 to i32
    %c0_i32_9 = arith.constant 0 : i32
    %11 = arith.cmpi ne, %10, %c0_i32_9 : i32
    scf.if %11 {
      %c0_10 = arith.constant 0 : index
      %c0_11 = arith.constant 0 : index
      %12 = vector.load %arg8[%c0_10, %c0_11] : memref<128x128xf32, #tpu.memory_space<vmem>>, vector<128x128xf32>
      %c0_12 = arith.constant 0 : index
      %c0_13 = arith.constant 0 : index
      %13 = vector.load %arg6[%c0_12, %c0_13] : memref<128x1xf32, #tpu.memory_space<vmem>>, vector<128x1xf32>
      %14 = vector.broadcast %13 : vector<128x1xf32> to vector<128x128xf32>
      %15 = arith.mulf %12, %14 : vector<128x128xf32>
      %c0_14 = arith.constant 0 : index
      %c0_15 = arith.constant 0 : index
      %16 = vector.load %arg5[%c0_14, %c0_15] : memref<1x128xf32, #tpu.memory_space<vmem>>, vector<1x128xf32>
      %17 = vector.broadcast %16 : vector<1x128xf32> to vector<128x128xf32>
      %18 = arith.addf %15, %17 : vector<128x128xf32>
      %19 = arith.truncf %18 : vector<128x128xf32> to vector<128x128xbf16>
      %c0_16 = arith.constant 0 : index
      %c0_17 = arith.constant 0 : index
      %20 = vector.load %arg7[%c0_16, %c0_17] : memref<128x128xbf16, #tpu.memory_space<vmem>>, vector<128x128xbf16>
      tpu.vector_store %arg7[%c0_16, %c0_17], %19 {strides = array<i32>} : memref<128x128xbf16, #tpu.memory_space<vmem>>, vector<128x128xbf16>,
    } else {
    }
    return
  }
  func.func @transform_0(%arg0: i32, %arg1: i32, %arg2: i32) -> (i32, i32) {
    %c0_i32 = arith.constant 0 : i32
    return %arg0, %arg2 : i32, i32
  }
  func.func @transform_1(%arg0: i32, %arg1: i32, %arg2: i32) -> (i32, i32) {
    %c0_i32 = arith.constant 0 : i32
    return %arg2, %arg1 : i32, i32
  }
  func.func @transform_2(%arg0: i32, %arg1: i32, %arg2: i32) -> (i32, i32) {
    %c0_i32 = arith.constant 0 : i32
    %c0_i32_0 = arith.constant 0 : i32
    return %c0_i32, %arg1 : i32, i32
  }
  func.func @transform_3(%arg0: i32, %arg1: i32, %arg2: i32) -> (i32, i32) {
    %c0_i32 = arith.constant 0 : i32
    %c0_i32_0 = arith.constant 0 : i32
    return %arg0, %c0_i32 : i32, i32
  }
  func.func @transform_4(%arg0: i32, %arg1: i32, %arg2: i32) -> (i32, i32) {
    %c0_i32 = arith.constant 0 : i32
    return %arg0, %arg1 : i32, i32
  }
}

</mosaic_0001>

<llo_original>
// kernel: tpu_custom_call.1
$region0: #{tpu_custom_call.1}
  #allocation0 [shape = 'u32[]', space=smem, size = 0x4, offset = 0x4, fixed_abs, tag = 'smem constant byte address 0x4 - core index']
  #allocation1 [shape = 'u32[144,128]{1,0:T(1,128)}', space=vmem, size = 0x12000, scoped, tag = 'internal scratch']
  #allocation2 [shape = 'f32[128,128]{1,0:T(8,128)}', space=vmem, size = 0x10000, scoped, tag = 'scratch operand']
  %s0 = inlined_call_operand.vmem [shape: bf16[128,128], index: 0, kind: input, shape index: {}]
  %s1 = inlined_call_operand.vmem [shape: bf16[128,128], index: 1, kind: input, shape index: {}]
  %s2 = inlined_call_operand.vmem [shape: f32[1,128], index: 2, kind: input, shape index: {}]
  %s3 = inlined_call_operand.vmem [shape: f32[128,1], index: 3, kind: input, shape index: {}]
  %s4 = inlined_call_operand.hbm [shape: bf16[128,128], index: 4, kind: output, shape index: {}]
  %s5 = sld [smem:[#allocation0]]
  $region34: #{tpu_custom_call.1} parent=0
    _
  %s7 = ssub.s32 1, %s5
  %s8 = scalar_select 0, %s7, %s5
  $region1: #{tpu_custom_call.1} parent=0
    #allocation3 [shape = 'u8[32768]{0}', space=vmem, size = 0x8000, scoped, tag = 'output window, operand 0, single buffered']
    #allocation4 [shape = 's32[1]{0}', space=sflag, size = 0x4, scoped, tag = 'scoped memory for tpu_custom_call.1']
    %9 = vsyncpa [#allocation4], 0
    // Predicated region
    $region2: #{tpu_custom_call.1} parent=1 // pred_check
      _
    $region3: #{tpu_custom_call.1} parent=1 // pred_check_branch
      %11 = sbr.rel (0) target = $region5
    $region4: #{tpu_custom_call.1} parent=1 // pred_region
      _
    $region5: #{tpu_custom_call.1} parent=1 // pred_fallthru
      _
    // Predicated region
    $region6: #{tpu_custom_call.1} parent=1 // pred_check
      _
    $region7: #{tpu_custom_call.1} parent=1 // pred_check_branch
      %13 = sbr.rel (0) target = $region9
    $region8: #{tpu_custom_call.1} parent=1 // pred_region
      _
    $region9: #{tpu_custom_call.1} parent=1 // pred_fallthru
      _
    // Predicated region
    $region10: #{tpu_custom_call.1} parent=1 // pred_check
      _
    $region11: #{tpu_custom_call.1} parent=1 // pred_check_branch
      %15 = sbr.rel (0) target = $region13
    $region12: #{tpu_custom_call.1} parent=1 // pred_region
      _
    $region13: #{tpu_custom_call.1} parent=1 // pred_fallthru
      _
    // Predicated region
    $region14: #{tpu_custom_call.1} parent=1 // pred_check
      _
    $region15: #{tpu_custom_call.1} parent=1 // pred_check_branch
      %17 = sbr.rel (0) target = $region17
    $region16: #{tpu_custom_call.1} parent=1 // pred_region
      _
    $region17: #{tpu_custom_call.1} parent=1 // pred_fallthru
      _
    %p19 = scmp.eq.s32.totalorder 0, 0
    // Predicated region
    $region18: #{tpu_custom_call.1} parent=1 // pred_check
      %p20 = pneg %p19
    $region19: #{tpu_custom_call.1} parent=1 // pred_check_branch
      %22 = sbr.rel (%p20) target = $region21
    $region20: #{tpu_custom_call.1} parent=1 // pred_region
      %23 = vst [vmem:[#allocation2] sm:$0xff] 0.0
      %24 = vst [vmem:[#allocation2 + $0x8] sm:$0xff] 0.0
      %25 = vst [vmem:[#allocation2 + $0x10] sm:$0xff] 0.0
      %26 = vst [vmem:[#allocation2 + $0x18] sm:$0xff] 0.0
      %27 = vst [vmem:[#allocation2 + $0x20] sm:$0xff] 0.0
      %28 = vst [vmem:[#allocation2 + $0x28] sm:$0xff] 0.0
      %29 = vst [vmem:[#allocation2 + $0x30] sm:$0xff] 0.0
      %30 = vst [vmem:[#allocation2 + $0x38] sm:$0xff] 0.0
      %31 = vst [vmem:[#allocation2 + $0x40] sm:$0xff] 0.0
      %32 = vst [vmem:[#allocation2 + $0x48] sm:$0xff] 0.0
      %33 = vst [vmem:[#allocation2 + $0x50] sm:$0xff] 0.0
      %34 = vst [vmem:[#allocation2 + $0x58] sm:$0xff] 0.0
      %35 = vst [vmem:[#allocation2 + $0x60] sm:$0xff] 0.0
      %36 = vst [vmem:[#allocation2 + $0x68] sm:$0xff] 0.0
      %37 = vst [vmem:[#allocation2 + $0x70] sm:$0xff] 0.0
      %38 = vst [vmem:[#allocation2 + $0x78] sm:$0xff] 0.0
    $region21: #{tpu_custom_call.1} parent=1 // pred_fallthru
      _
    %v39 = vld [vmem:[#allocation2] sm:$0xff]
    %v40 = vld [vmem:[#allocation2 + $0x8] sm:$0xff]
    %v41 = vld [vmem:[#allocation2 + $0x10] sm:$0xff]
    %v42 = vld [vmem:[#allocation2 + $0x18] sm:$0xff]
    %v43 = vld [vmem:[#allocation2 + $0x20] sm:$0xff]
    %v44 = vld [vmem:[#allocation2 + $0x28] sm:$0xff]
    %v45 = vld [vmem:[#allocation2 + $0x30] sm:$0xff]
    %v46 = vld [vmem:[#allocation2 + $0x38] sm:$0xff]
    %v47 = vld [vmem:[#allocation2 + $0x40] sm:$0xff]
    %v48 = vld [vmem:[#allocation2 + $0x48] sm:$0xff]
    %v49 = vld [vmem:[#allocation2 + $0x50] sm:$0xff]
    %v50 = vld [vmem:[#allocation2 + $0x58] sm:$0xff]
    %v51 = vld [vmem:[#allocation2 + $0x60] sm:$0xff]
    %v52 = vld [vmem:[#allocation2 + $0x68] sm:$0xff]
    %v53 = vld [vmem:[#allocation2 + $0x70] sm:$0xff]
    %v54 = vld [vmem:[#allocation2 + $0x78] sm:$0xff]
    %v55 = vld [vmem:[%s0] sm:$0xf]
    %v56 = vld [vmem:[%s0 + $0x4] sm:$0xf]
    %v57 = vld [vmem:[%s0 + $0x8] sm:$0xf]
    %v58 = vld [vmem:[%s0 + $0xc] sm:$0xf]
    %v59 = vld [vmem:[%s0 + $0x10] sm:$0xf]
    %v60 = vld [vmem:[%s0 + $0x14] sm:$0xf]
    %v61 = vld [vmem:[%s0 + $0x18] sm:$0xf]
    %v62 = vld [vmem:[%s0 + $0x1c] sm:$0xf]
    %v63 = vld [vmem:[%s0 + $0x20] sm:$0xf]
    %v64 = vld [vmem:[%s0 + $0x24] sm:$0xf]
    %v65 = vld [vmem:[%s0 + $0x28] sm:$0xf]
    %v66 = vld [vmem:[%s0 + $0x2c] sm:$0xf]
    %v67 = vld [vmem:[%s0 + $0x30] sm:$0xf]
    %v68 = vld [vmem:[%s0 + $0x34] sm:$0xf]
    %v69 = vld [vmem:[%s0 + $0x38] sm:$0xf]
    %v70 = vld [vmem:[%s0 + $0x3c] sm:$0xf]
    %v71 = vld [vmem:[%s1] sm:$0xf]
    %v72 = vld [vmem:[%s1 + $0x4] sm:$0xf]
    %v73 = vld [vmem:[%s1 + $0x8] sm:$0xf]
    %v74 = vld [vmem:[%s1 + $0xc] sm:$0xf]
    %v75 = vld [vmem:[%s1 + $0x10] sm:$0xf]
    %v76 = vld [vmem:[%s1 + $0x14] sm:$0xf]
    %v77 = vld [vmem:[%s1 + $0x18] sm:$0xf]
    %v78 = vld [vmem:[%s1 + $0x1c] sm:$0xf]
    %v79 = vld [vmem:[%s1 + $0x20] sm:$0xf]
    %v80 = vld [vmem:[%s1 + $0x24] sm:$0xf]
    %v81 = vld [vmem:[%s1 + $0x28] sm:$0xf]
    %v82 = vld [vmem:[%s1 + $0x2c] sm:$0xf]
    %v83 = vld [vmem:[%s1 + $0x30] sm:$0xf]
    %v84 = vld [vmem:[%s1 + $0x34] sm:$0xf]
    %v85 = vld [vmem:[%s1 + $0x38] sm:$0xf]
    %v86 = vld [vmem:[%s1 + $0x3c] sm:$0xf]
    %v103 = vunpack.c.l.b16 %v55
    %v104 = vunpack.c.l.b16 %v56
    %v105 = vunpack.c.l.b16 %v57
    %v106 = vunpack.c.l.b16 %v58
    %v107 = vunpack.c.l.b16 %v59
    %v108 = vunpack.c.l.b16 %v60
    %v109 = vunpack.c.l.b16 %v61
    %v110 = vunpack.c.l.b16 %v62
    %v111 = vunpack.c.l.b16 %v63
    %v112 = vunpack.c.l.b16 %v64
    %v113 = vunpack.c.l.b16 %v65
    %v114 = vunpack.c.l.b16 %v66
    %v115 = vunpack.c.l.b16 %v67
    %v116 = vunpack.c.l.b16 %v68
    %v117 = vunpack.c.l.b16 %v69
    %v118 = vunpack.c.l.b16 %v70
    %v119 = vpack.c.b16 %v104, %v103
    %v120 = vpack.c.b16 %v106, %v105
    %v121 = vpack.c.b16 %v108, %v107
    %v122 = vpack.c.b16 %v110, %v109
    %v123 = vpack.c.b16 %v112, %v111
    %v124 = vpack.c.b16 %v114, %v113
    %v125 = vpack.c.b16 %v116, %v115
    %v126 = vpack.c.b16 %v118, %v117
    %v151 = vunpack.c.l.b16 %v71
    %v152 = vunpack.c.l.b16 %v72
    %v153 = vunpack.c.l.b16 %v73
    %v154 = vunpack.c.l.b16 %v74
    %v155 = vunpack.c.l.b16 %v75
    %v156 = vunpack.c.l.b16 %v76
    %v157 = vunpack.c.l.b16 %v77
    %v158 = vunpack.c.l.b16 %v78
    %v159 = vunpack.c.l.b16 %v79
    %v160 = vunpack.c.l.b16 %v80
    %v161 = vunpack.c.l.b16 %v81
    %v162 = vunpack.c.l.b16 %v82
    %v163 = vunpack.c.l.b16 %v83
    %v164 = vunpack.c.l.b16 %v84
    %v165 = vunpack.c.l.b16 %v85
    %v166 = vunpack.c.l.b16 %v86
    %v167 = vpack.c.b16 %v152, %v151
    %v168 = vpack.c.b16 %v154, %v153
    %v169 = vpack.c.b16 %v156, %v155
    %v170 = vpack.c.b16 %v158, %v157
    %v171 = vpack.c.b16 %v160, %v159
    %v172 = vpack.c.b16 %v162, %v161
    %v173 = vpack.c.b16 %v164, %v163
    %v174 = vpack.c.b16 %v166, %v165
    %183 = vmatprep.subr.bf16.mxu0 0
    %184 = vmatpush1.bf16.msra.mxu0 %v167
    %185 = vmatprep.subr.bf16.mxu0 0
    %186 = vmatpush1.bf16.msra.mxu0 %v168
    %187 = vmatprep.subr.bf16.mxu0 0
    %188 = vmatpush1.bf16.msra.mxu0 %v169
    %189 = vmatprep.subr.bf16.mxu0 0
    %190 = vmatpush1.bf16.msra.mxu0 %v170
    %191 = vmatprep.subr.bf16.mxu0 0
    %192 = vmatpush1.bf16.msra.mxu0 %v171
    %193 = vmatprep.subr.bf16.mxu0 0
    %194 = vmatpush1.bf16.msra.mxu0 %v172
    %195 = vmatprep.subr.bf16.mxu0 0
    %196 = vmatpush1.bf16.msra.mxu0 %v173
    %197 = vmatprep.subr.bf16.mxu0 0
    %198 = vmatpush1.bf16.msra.mxu0 %v174
    %199 = vmatprep.subr.bf16.mxu0 0
    %200 = vmatpush1.bf16.msra.mxu0 0
    %201 = vmatprep.subr.bf16.mxu0 0
    %202 = vmatpush1.bf16.msra.mxu0 0
    %203 = vmatprep.subr.bf16.mxu0 0
    %204 = vmatpush1.bf16.msra.mxu0 0
    %205 = vmatprep.subr.bf16.mxu0 0
    %206 = vmatpush1.bf16.msra.mxu0 0
    %207 = vmatprep.subr.bf16.mxu0 0
    %208 = vmatpush1.bf16.msra.mxu0 0
    %209 = vmatprep.subr.bf16.mxu0 0
    %210 = vmatpush1.bf16.msra.mxu0 0
    %211 = vmatprep.subr.bf16.mxu0 0
    %212 = vmatpush1.bf16.msra.mxu0 0
    %213 = vmatprep.subr.bf16.mxu0 0
    %214 = vmatpush1.bf16.msra.mxu0 0
    %215 = vmatprep.mubr.bf16.mxu0 0
    %216 = vmatmul.mubr.bf16.gmra.mrb[0].mxu0 %v119
    %v217 = vpop.f32.mrb[0].mxu0
    %v218 = vadd.f32 0.0, %v217
    %v219 = vpop.f32.mrb[0].mxu0
    %v220 = vpop.f32.mrb[0].mxu0
    %v221 = vadd.f32 0.0, %v220
    %v222 = vpop.f32.mrb[0].mxu0
    %223 = vmatprep.mubr.bf16.mxu0 0
    %224 = vmatmul.mubr.bf16.gmra.mrb[0].mxu0 %v120
    %v225 = vpop.f32.mrb[0].mxu0
    %v226 = vadd.f32 0.0, %v225
    %v227 = vpop.f32.mrb[0].mxu0
    %v228 = vpop.f32.mrb[0].mxu0
    %v229 = vadd.f32 0.0, %v228
    %v230 = vpop.f32.mrb[0].mxu0
    %231 = vmatprep.mubr.bf16.mxu0 0
    %232 = vmatmul.mubr.bf16.gmra.mrb[0].mxu0 %v121
    %v233 = vpop.f32.mrb[0].mxu0
    %v234 = vadd.f32 0.0, %v233
    %v235 = vpop.f32.mrb[0].mxu0
    %v236 = vpop.f32.mrb[0].mxu0
    %v237 = vadd.f32 0.0, %v236
    %v238 = vpop.f32.mrb[0].mxu0
    %239 = vmatprep.mubr.bf16.mxu0 0
    %240 = vmatmul.mubr.bf16.gmra.mrb[0].mxu0 %v122
    %v241 = vpop.f32.mrb[0].mxu0
    %v242 = vadd.f32 0.0, %v241
    %v243 = vpop.f32.mrb[0].mxu0
    %v244 = vpop.f32.mrb[0].mxu0
    %v245 = vadd.f32 0.0, %v244
    %v246 = vpop.f32.mrb[0].mxu0
    %247 = vmatprep.mubr.bf16.mxu0 0
    %248 = vmatmul.mubr.bf16.gmra.mrb[0].mxu0 %v123
    %v249 = vpop.f32.mrb[0].mxu0
    %v250 = vadd.f32 0.0, %v249
    %v251 = vpop.f32.mrb[0].mxu0
    %v252 = vpop.f32.mrb[0].mxu0
    %v253 = vadd.f32 0.0, %v252
    %v254 = vpop.f32.mrb[0].mxu0
    %255 = vmatprep.mubr.bf16.mxu0 0
    %256 = vmatmul.mubr.bf16.gmra.mrb[0].mxu0 %v124
    %v257 = vpop.f32.mrb[0].mxu0
    %v258 = vadd.f32 0.0, %v257
    %v259 = vpop.f32.mrb[0].mxu0
    %v260 = vpop.f32.mrb[0].mxu0
    %v261 = vadd.f32 0.0, %v260
    %v262 = vpop.f32.mrb[0].mxu0
    %263 = vmatprep.mubr.bf16.mxu0 0
    %264 = vmatmul.mubr.bf16.gmra.mrb[0].mxu0 %v125
    %v265 = vpop.f32.mrb[0].mxu0
    %v266 = vadd.f32 0.0, %v265
    %v267 = vpop.f32.mrb[0].mxu0
    %v268 = vpop.f32.mrb[0].mxu0
    %v269 = vadd.f32 0.0, %v268
    %v270 = vpop.f32.mrb[0].mxu0
    %271 = vmatprep.mubr.bf16.mxu0 0
    %272 = vmatmul.mubr.bf16.gmra.mrb[0].mxu0 %v126
    %v273 = vpop.f32.mrb[0].mxu0
    %v274 = vadd.f32 0.0, %v273
    %v275 = vpop.f32.mrb[0].mxu0
    %v276 = vpop.f32.mrb[0].mxu0
    %v277 = vadd.f32 0.0, %v276
    %v278 = vpop.f32.mrb[0].mxu0
    %279 = vdwg.mxu0
    %v280 = vadd.f32 %v39, %v218
    %v281 = vadd.f32 %v40, %v221
    %v282 = vadd.f32 %v41, %v226
    %v283 = vadd.f32 %v42, %v229
    %v284 = vadd.f32 %v43, %v234
    %v285 = vadd.f32 %v44, %v237
    %v286 = vadd.f32 %v45, %v242
    %v287 = vadd.f32 %v46, %v245
    %v288 = vadd.f32 %v47, %v250
    %v289 = vadd.f32 %v48, %v253
    %v290 = vadd.f32 %v49, %v258
    %v291 = vadd.f32 %v50, %v261
    %v292 = vadd.f32 %v51, %v266
    %v293 = vadd.f32 %v52, %v269
    %v294 = vadd.f32 %v53, %v274
    %v295 = vadd.f32 %v54, %v277
    %296 = vst [vmem:[#allocation2] sm:$0xff] %v280
    %297 = vst [vmem:[#allocation2 + $0x8] sm:$0xff] %v281
    %298 = vst [vmem:[#allocation2 + $0x10] sm:$0xff] %v282
    %299 = vst [vmem:[#allocation2 + $0x18] sm:$0xff] %v283
    %300 = vst [vmem:[#allocation2 + $0x20] sm:$0xff] %v284
    %301 = vst [vmem:[#allocation2 + $0x28] sm:$0xff] %v285
    %302 = vst [vmem:[#allocation2 + $0x30] sm:$0xff] %v286
    %303 = vst [vmem:[#allocation2 + $0x38] sm:$0xff] %v287
    %304 = vst [vmem:[#allocation2 + $0x40] sm:$0xff] %v288
    %305 = vst [vmem:[#allocation2 + $0x48] sm:$0xff] %v289
    %306 = vst [vmem:[#allocation2 + $0x50] sm:$0xff] %v290
    %307 = vst [vmem:[#allocation2 + $0x58] sm:$0xff] %v291
    %308 = vst [vmem:[#allocation2 + $0x60] sm:$0xff] %v292
    %309 = vst [vmem:[#allocation2 + $0x68] sm:$0xff] %v293
    %310 = vst [vmem:[#allocation2 + $0x70] sm:$0xff] %v294
    %311 = vst [vmem:[#allocation2 + $0x78] sm:$0xff] %v295
    // Predicated region
    $region22: #{tpu_custom_call.1} parent=1 // pred_check
      %p312 = pneg %p19
    $region23: #{tpu_custom_call.1} parent=1 // pred_check_branch
      %314 = sbr.rel (%p312) target = $region25
    $region24: #{tpu_custom_call.1} parent=1 // pred_region
      %v315 = vld [vmem:[#allocation2] sm:$0xff]
      %v316 = vld [vmem:[#allocation2 + $0x8] sm:$0xff]
      %v317 = vld [vmem:[#allocation2 + $0x10] sm:$0xff]
      %v318 = vld [vmem:[#allocation2 + $0x18] sm:$0xff]
      %v319 = vld [vmem:[#allocation2 + $0x20] sm:$0xff]
      %v320 = vld [vmem:[#allocation2 + $0x28] sm:$0xff]
      %v321 = vld [vmem:[#allocation2 + $0x30] sm:$0xff]
      %v322 = vld [vmem:[#allocation2 + $0x38] sm:$0xff]
      %v323 = vld [vmem:[#allocation2 + $0x40] sm:$0xff]
      %v324 = vld [vmem:[#allocation2 + $0x48] sm:$0xff]
      %v325 = vld [vmem:[#allocation2 + $0x50] sm:$0xff]
      %v326 = vld [vmem:[#allocation2 + $0x58] sm:$0xff]
      %v327 = vld [vmem:[#allocation2 + $0x60] sm:$0xff]
      %v328 = vld [vmem:[#allocation2 + $0x68] sm:$0xff]
      %v329 = vld [vmem:[#allocation2 + $0x70] sm:$0xff]
      %v330 = vld [vmem:[#allocation2 + $0x78] sm:$0xff]
      %v331 = vld [vmem:[%s3] sm:$0xff]
      %v332 = vld [vmem:[%s3 + $0x8] sm:$0xff]
      %v333 = vld [vmem:[%s3 + $0x10] sm:$0xff]
      %v334 = vld [vmem:[%s3 + $0x18] sm:$0xff]
      %v335 = vld [vmem:[%s3 + $0x20] sm:$0xff]
      %v336 = vld [vmem:[%s3 + $0x28] sm:$0xff]
      %v337 = vld [vmem:[%s3 + $0x30] sm:$0xff]
      %v338 = vld [vmem:[%s3 + $0x38] sm:$0xff]
      %v339 = vld [vmem:[%s3 + $0x40] sm:$0xff]
      %v340 = vld [vmem:[%s3 + $0x48] sm:$0xff]
      %v341 = vld [vmem:[%s3 + $0x50] sm:$0xff]
      %v342 = vld [vmem:[%s3 + $0x58] sm:$0xff]
      %v343 = vld [vmem:[%s3 + $0x60] sm:$0xff]
      %v344 = vld [vmem:[%s3 + $0x68] sm:$0xff]
      %v345 = vld [vmem:[%s3 + $0x70] sm:$0xff]
      %v346 = vld [vmem:[%s3 + $0x78] sm:$0xff]
      %348 = vset.pattern.permute.xlu0 0
      %349 = vperm.xlu0 %348, %v331
      %v350 = vpop.permute.xlu0 %349
      %353 = vset.pattern.permute.xlu0 0
      %354 = vperm.xlu0 %353, %v332
      %v355 = vpop.permute.xlu0 %354
      %358 = vset.pattern.permute.xlu0 0
      %359 = vperm.xlu0 %358, %v333
      %v360 = vpop.permute.xlu0 %359
      %363 = vset.pattern.permute.xlu0 0
      %364 = vperm.xlu0 %363, %v334
      %v365 = vpop.permute.xlu0 %364
      %368 = vset.pattern.permute.xlu0 0
      %369 = vperm.xlu0 %368, %v335
      %v370 = vpop.permute.xlu0 %369
      %373 = vset.pattern.permute.xlu0 0
      %374 = vperm.xlu0 %373, %v336
      %v375 = vpop.permute.xlu0 %374
      %378 = vset.pattern.permute.xlu0 0
      %379 = vperm.xlu0 %378, %v337
      %v380 = vpop.permute.xlu0 %379
      %383 = vset.pattern.permute.xlu0 0
      %384 = vperm.xlu0 %383, %v338
      %v385 = vpop.permute.xlu0 %384
      %388 = vset.pattern.permute.xlu0 0
      %389 = vperm.xlu0 %388, %v339
      %v390 = vpop.permute.xlu0 %389
      %393 = vset.pattern.permute.xlu0 0
      %394 = vperm.xlu0 %393, %v340
      %v395 = vpop.permute.xlu0 %394
      %398 = vset.pattern.permute.xlu0 0
      %399 = vperm.xlu0 %398, %v341
      %v400 = vpop.permute.xlu0 %399
      %403 = vset.pattern.permute.xlu0 0
      %404 = vperm.xlu0 %403, %v342
      %v405 = vpop.permute.xlu0 %404
      %408 = vset.pattern.permute.xlu0 0
      %409 = vperm.xlu0 %408, %v343
      %v410 = vpop.permute.xlu0 %409
      %413 = vset.pattern.permute.xlu0 0
      %414 = vperm.xlu0 %413, %v344
      %v415 = vpop.permute.xlu0 %414
      %418 = vset.pattern.permute.xlu0 0
      %419 = vperm.xlu0 %418, %v345
      %v420 = vpop.permute.xlu0 %419
      %423 = vset.pattern.permute.xlu0 0
      %424 = vperm.xlu0 %423, %v346
      %v425 = vpop.permute.xlu0 %424
      %v427 = vmul.f32 %v315, %v350
      %v428 = vmul.f32 %v316, %v355
      %v429 = vmul.f32 %v317, %v360
      %v430 = vmul.f32 %v318, %v365
      %v431 = vmul.f32 %v319, %v370
      %v432 = vmul.f32 %v320, %v375
      %v433 = vmul.f32 %v321, %v380
      %v434 = vmul.f32 %v322, %v385
      %v435 = vmul.f32 %v323, %v390
      %v436 = vmul.f32 %v324, %v395
      %v437 = vmul.f32 %v325, %v400
      %v438 = vmul.f32 %v326, %v405
      %v439 = vmul.f32 %v327, %v410
      %v440 = vmul.f32 %v328, %v415
      %v441 = vmul.f32 %v329, %v420
      %v442 = vmul.f32 %v330, %v425
      %v443 = vld [vmem:[%s2] sm:$0x1]
      %v445 = vlaneseq
      %v446 = vshrl.u32 %v445, 7
      %v447 = vsub.s32 0, %v446
      %v448 = vrot.slane %v443, %v447
      %v450 = vadd.f32 %v427, %v448
      %v451 = vadd.f32 %v428, %v448
      %v452 = vadd.f32 %v429, %v448
      %v453 = vadd.f32 %v430, %v448
      %v454 = vadd.f32 %v431, %v448
      %v455 = vadd.f32 %v432, %v448
      %v456 = vadd.f32 %v433, %v448
      %v457 = vadd.f32 %v434, %v448
      %v458 = vadd.f32 %v435, %v448
      %v459 = vadd.f32 %v436, %v448
      %v460 = vadd.f32 %v437, %v448
      %v461 = vadd.f32 %v438, %v448
      %v462 = vadd.f32 %v439, %v448
      %v463 = vadd.f32 %v440, %v448
      %v464 = vadd.f32 %v441, %v448
      %v465 = vadd.f32 %v442, %v448
      %v466 = vpack.c.bf16 %v451, %v450
      %v467 = vpack.c.bf16 %v453, %v452
      %v468 = vpack.c.bf16 %v455, %v454
      %v469 = vpack.c.bf16 %v457, %v456
      %v470 = vpack.c.bf16 %v459, %v458
      %v471 = vpack.c.bf16 %v461, %v460
      %v472 = vpack.c.bf16 %v463, %v462
      %v473 = vpack.c.bf16 %v465, %v464
      %v482 = vunpack.c.l.b16 %v466
      %v483 = vunpack.c.h.b16 %v466
      %v484 = vunpack.c.l.b16 %v467
      %v485 = vunpack.c.h.b16 %v467
      %v486 = vunpack.c.l.b16 %v468
      %v487 = vunpack.c.h.b16 %v468
      %v488 = vunpack.c.l.b16 %v469
      %v489 = vunpack.c.h.b16 %v469
      %v490 = vunpack.c.l.b16 %v470
      %v491 = vunpack.c.h.b16 %v470
      %v492 = vunpack.c.l.b16 %v471
      %v493 = vunpack.c.h.b16 %v471
      %v494 = vunpack.c.l.b16 %v472
      %v495 = vunpack.c.h.b16 %v472
      %v496 = vunpack.c.l.b16 %v473
      %v497 = vunpack.c.h.b16 %v473
      %v498 = vpack.c.b16 %v482, %v482
      %v499 = vpack.c.b16 %v483, %v483
      %v500 = vpack.c.b16 %v484, %v484
      %v501 = vpack.c.b16 %v485, %v485
      %v502 = vpack.c.b16 %v486, %v486
      %v503 = vpack.c.b16 %v487, %v487
      %v504 = vpack.c.b16 %v488, %v488
      %v505 = vpack.c.b16 %v489, %v489
      %v506 = vpack.c.b16 %v490, %v490
      %v507 = vpack.c.b16 %v491, %v491
      %v508 = vpack.c.b16 %v492, %v492
      %v509 = vpack.c.b16 %v493, %v493
      %v510 = vpack.c.b16 %v494, %v494
      %v511 = vpack.c.b16 %v495, %v495
      %v512 = vpack.c.b16 %v496, %v496
      %v513 = vpack.c.b16 %v497, %v497
      %530 = vst [vmem:[#allocation3] sm:$0xf] %v498
      %531 = vst [vmem:[#allocation3 + $0x4] sm:$0xf] %v499
      %532 = vst [vmem:[#allocation3 + $0x8] sm:$0xf] %v500
      %533 = vst [vmem:[#allocation3 + $0xc] sm:$0xf] %v501
      %534 = vst [vmem:[#allocation3 + $0x10] sm:$0xf] %v502
      %535 = vst [vmem:[#allocation3 + $0x14] sm:$0xf] %v503
      %536 = vst [vmem:[#allocation3 + $0x18] sm:$0xf] %v504
      %537 = vst [vmem:[#allocation3 + $0x1c] sm:$0xf] %v505
      %538 = vst [vmem:[#allocation3 + $0x20] sm:$0xf] %v506
      %539 = vst [vmem:[#allocation3 + $0x24] sm:$0xf] %v507
      %540 = vst [vmem:[#allocation3 + $0x28] sm:$0xf] %v508
      %541 = vst [vmem:[#allocation3 + $0x2c] sm:$0xf] %v509
      %542 = vst [vmem:[#allocation3 + $0x30] sm:$0xf] %v510
      %543 = vst [vmem:[#allocation3 + $0x34] sm:$0xf] %v511
      %544 = vst [vmem:[#allocation3 + $0x38] sm:$0xf] %v512
      %545 = vst [vmem:[#allocation3 + $0x3c] sm:$0xf] %v513
    $region25: #{tpu_custom_call.1} parent=1 // pred_fallthru
      _
    // Predicated region
    $region26: #{tpu_custom_call.1} parent=1 // pred_check
      _
    $region27: #{tpu_custom_call.1} parent=1 // pred_check_branch
      %547 = sbr.rel (0) target = $region29
    $region28: #{tpu_custom_call.1} parent=1 // pred_region
      %s549 = ssub.s32 1024, 1024
      %550 = vsyncadd [#allocation4], %s549
      %s551 = sshll.u32 [#allocation3], 4
      %s552 = int_to_ptr.vmem [resolvable:$true] %s551
      %557 = dma.vmem_to_hbm [thread:$0]  %s552, 1024, %s4, [#allocation4], 64, 64, 4
    $region29: #{tpu_custom_call.1} parent=1 // pred_fallthru
      _
    // Predicated region
    $region30: #{tpu_custom_call.1} parent=1 // pred_check
      _
    $region31: #{tpu_custom_call.1} parent=1 // pred_check_branch
      %559 = sbr.rel (0) target = $region33
    $region32: #{tpu_custom_call.1} parent=1 // pred_region
      %560 = dma.done [#allocation4], 1024
    $region33: #{tpu_custom_call.1} parent=1 // pred_fallthru
      _
    %561 = vsyncpa [#allocation4], 1

</llo_original>
